<compile_context>
chip_gen: v7x
topology: tpu7x:2x2x1
jax: 0.10.0
libtpu: 0.0.40
codegen_flags: <defaults>
</compile_context>

<pallas_src>
import functools

import jax
import jax.numpy as jnp
from jax.experimental import pallas as pl
from jax.experimental.pallas import tpu as pltpu


def _round_up(n, m):
    return (n + m - 1) // m * m


_VMEM_CAP = None


def _vmem_cap_bytes():
    global _VMEM_CAP
    if _VMEM_CAP is None:
        try:
            _VMEM_CAP = int(pltpu.get_tpu_info().vmem_capacity_bytes)
        except Exception:
            _VMEM_CAP = 64 * 1024 * 1024   # conservative (v7x per-TC) default
    return _VMEM_CAP


def _pick_tb(batch, h_pad, n_pad):
    """Batch tile: multiple of 16 (bf16 packs 16 sublanes/vreg), >=2 grid steps
    when possible (v7x megacore), capped so the f32 h-accumulator + output
    blocks stay well inside VMEM."""
    tb = min(512, _round_up(batch, 16))
    if batch > 16:
        tb = min(tb, max(16, _round_up((batch + 1) // 2, 16)))
    budget = max(_vmem_cap_bytes() // 4, 8 << 20)
    while tb > 16 and tb * (h_pad * 4 + n_pad * 8) > budget:
        tb = max(16, _round_up(tb // 2, 16))
    return tb


def _pick_tk(din_pad):
    """fc1 K-reduction tile: bounds the streamed w1 block to tk x h_pad bf16."""
    for tk in (512, 256, 128):
        if din_pad % tk == 0:
            return tk
    return din_pad


# ----------------------------- Pallas kernel -------------------------------


def _make_fused_kernel(task_windows):
    """task_windows: static tuple of (g_lo, width, off, n) per head; the
    128-aligned lane window [g_lo, g_lo+width) covers head lanes [off, off+n)
    of the concatenated classifier slab."""

    def kernel(x_ref, w1_ref, b1_ref, wh_ref, bh_ref, o_ref, h_acc):
        k = pl.program_id(1)

        @pl.when(k == 0)
        def _():
            h_acc[...] = jnp.zeros_like(h_acc)

        # fc1 partial product: bf16 MXU inputs, f32 accumulation in VMEM.
        h_acc[...] += jnp.dot(x_ref[...], w1_ref[...],
                              preferred_element_type=jnp.float32)

        @pl.when(k == pl.num_programs(1) - 1)
        def _():
            # Epilogue only on the last K step: bias + relu (f32), then all
            # heads in one lane-dense MXU pass.
            h = jnp.maximum(h_acc[...] + b1_ref[...], 0.0)
            logits = jnp.dot(h.astype(wh_ref.dtype), wh_ref[...],
                             preferred_element_type=jnp.float32)
            logits = logits + bh_ref[...]

            neg_inf = jnp.float32(-jnp.inf)
            written = set()          # 128-lane groups already holding results
            for g_lo, width, off, n in task_windows:      # static unroll
                groups = set(range(g_lo, g_lo + width, 128))
                sub = logits[:, g_lo:g_lo + width]        # static 128-aligned
                if n == width:
                    # Window is exactly this head: no masking needed.
                    m = jnp.max(sub, axis=1, keepdims=True)
                    shifted = sub - m
                    lse = jnp.log(jnp.sum(jnp.exp(shifted), axis=1,
                                          keepdims=True))
                    o_ref[:, g_lo:g_lo + width] = (shifted - lse).astype(
                        o_ref.dtype)
                else:
                    col = jax.lax.broadcasted_iota(jnp.int32, sub.shape, 1)
                    mask = (col >= off - g_lo) & (col < off + n - g_lo)
                    m = jnp.max(jnp.where(mask, sub, neg_inf), axis=1,
                                keepdims=True)
                    shifted = sub - m
                    p = jnp.exp(jnp.where(mask, shifted, neg_inf))  # exp(-inf)=0
                    lse = jnp.log(jnp.sum(p, axis=1, keepdims=True))
                    res = (shifted - lse).astype(o_ref.dtype)
                    if groups & written:
                        # Another head already wrote into this lane group:
                        # select its lanes back in.
                        prev = o_ref[:, g_lo:g_lo + width]
                        o_ref[:, g_lo:g_lo + width] = jnp.where(mask, res, prev)
                    else:
                        o_ref[:, g_lo:g_lo + width] = res
                written |= groups

    return kernel


# ------------------------------ JAX wrapper ---------------------------------


@functools.partial(
    jax.jit, static_argnames=("task_windows", "heads", "single_buffer_weights"))
def _forward_impl(x, w1, b1, wh, bh, *, task_windows, heads,
                  single_buffer_weights):
    batch = x.shape[0]
    xb = jnp.reshape(x, (batch, -1)).astype(jnp.bfloat16)
    din = xb.shape[1]
    din_pad, h_pad = w1.shape
    n_pad = wh.shape[1]

    tb = _pick_tb(batch, h_pad, n_pad)
    tk = _pick_tk(din_pad)
    b_pad = _round_up(batch, tb)

    # Single fused cast+pad of x (nothing at all when shapes already align).
    pad_b, pad_d = b_pad - batch, din_pad - din
    if pad_b or pad_d:
        xb = jnp.pad(xb, ((0, pad_b), (0, pad_d)))

    grid = (b_pad // tb, din_pad // tk)

    def _const_spec(shape):
        idx = lambda i, k: (0, 0)
        if single_buffer_weights:
            return pl.BlockSpec(shape, idx, pipeline_mode=pl.Buffered(1))
        return pl.BlockSpec(shape, idx)

    wbuf = 1 if single_buffer_weights else 2
    vmem_est = (2 * tb * tk * 2              # x blocks (bf16, double-buffered)
                + 2 * tk * h_pad * 2         # w1 blocks (streamed over K)
                + wbuf * h_pad * 4           # b1
                + wbuf * h_pad * n_pad * 2   # head weight slab
                + wbuf * n_pad * 4           # head bias slab
                + 2 * tb * n_pad * 4         # output blocks
                + tb * h_pad * 4)            # f32 h accumulator (scratch)
    # Headroom for in-kernel temporaries (logits slab, exp/select temps).
    vmem_limit = int(vmem_est * 1.5) + 4 * tb * n_pad * 4 + (4 << 20)
    vmem_limit = max(32 << 20, min(vmem_limit, int(_vmem_cap_bytes() * 0.9)))

    slab = pl.pallas_call(
        _make_fused_kernel(task_windows),
        out_shape=jax.ShapeDtypeStruct((b_pad, n_pad), jnp.float32),
        grid_spec=pltpu.PrefetchScalarGridSpec(
            num_scalar_prefetch=0,
            grid=grid,
            in_specs=[
                pl.BlockSpec((tb, tk), lambda i, k: (i, k)),
                pl.BlockSpec((tk, h_pad), lambda i, k: (k, 0)),
                _const_spec((1, h_pad)),
                _const_spec((h_pad, n_pad)),
                _const_spec((1, n_pad)),
            ],
            out_specs=pl.BlockSpec((tb, n_pad), lambda i, k: (i, 0)),
            scratch_shapes=[pltpu.VMEM((tb, h_pad), jnp.float32)],
        ),
        compiler_params=pltpu.CompilerParams(
            dimension_semantics=("parallel", "arbitrary"),
            vmem_limit_bytes=vmem_limit),
    )(xb, w1, b1, wh, bh)

    # Per-task views, one per taskcla entry (same routing as classifier[t]).
    return tuple(slab[:batch, off:off + n] for off, n in heads)


class BayesianMLPPallas:
    """Deterministic mean-weight (sample=False) forward of UCB BayesianMLP."""

    def __init__(self, ncha, n_time_samples, n_observations, nhid, taskcla, key):
        self.taskcla = tuple((int(t), int(n)) for t, n in taskcla)
        self.din = ncha * n_time_samples * n_observations
        self.nhid = nhid
        # NOTE: padding to the 128-lane MXU tile dilutes FLOPs when din/nhid /
        # total class count sit far below a multiple of 128 (e.g. nhid=32 ->
        # 75% zero lanes in fc1); picking nhid as a multiple of 128 (256 on
        # v6e/v7x) is the only way to make these MXU passes dense.
        self.din_pad = _round_up(self.din, 128)
        self.h_pad = _round_up(nhid, 128)

        # Dense lane layout of the concatenated classifier slab, in
        # classifier-list order (== taskcla order, as the original ModuleList).
        slices, off = [], 0
        for _, n in self.taskcla:
            slices.append((off, int(n)))
            off += int(n)
        self.task_slices = tuple(slices)
        self.n_total = off
        self.n_pad = _round_up(max(off, 1), 128)

        # Static 128-aligned covering window per head for the in-kernel
        # log_softmax (epilogue touches only these lanes, not the full slab).
        windows = []
        for o, n in self.task_slices:
            g_lo = (o // 128) * 128
            g_hi = _round_up(o + n, 128)
            windows.append((g_lo, g_hi - g_lo, o, n))
        self.task_windows = tuple(windows)

        # forward() emits one output per taskcla entry, using classifier[t]
        # exactly like the original module (`self.classifier[t](x)`).
        self.heads = tuple(self.task_slices[t] for t, _ in self.taskcla)

        k1, k2, *kc = jax.random.split(key, 2 + 2 * len(self.taskcla))

        # BayesianLinear mean parameters (weight_mu, bias_mu), init ~ N(0, 0.1)
        w1 = 0.1 * jax.random.normal(k1, (self.din, nhid), jnp.float32)
        b1 = 0.1 * jax.random.normal(k2, (1, nhid), jnp.float32)
        self.w1 = (jnp.zeros((self.din_pad, self.h_pad), jnp.bfloat16)
                   .at[: self.din, :nhid].set(w1.astype(jnp.bfloat16)))
        self.b1 = (jnp.zeros((1, self.h_pad), jnp.float32)
                   .at[:, :nhid].set(b1))

        wh = jnp.zeros((self.h_pad, self.n_pad), jnp.bfloat16)
        bh = jnp.zeros((1, self.n_pad), jnp.float32)
        for i, (_, n) in enumerate(self.taskcla):
            wk, bk = kc[2 * i], kc[2 * i + 1]
            wc = 0.1 * jax.random.normal(wk, (nhid, n), jnp.float32)
            bc = 0.1 * jax.random.normal(bk, (1, n), jnp.float32)
            o, _ = self.task_slices[i]
            wh = wh.at[:nhid, o:o + n].set(wc.astype(jnp.bfloat16))
            bh = bh.at[:, o:o + n].set(bc)
        self.wh = wh
        self.bh = bh

        self._single_buffer_ok = None    # probed on first forward()

    # TODO(synk): sample=True path (reparameterized weight sampling inside
    # BayesianLinear) is not implemented; only the mean/deterministic forward.
    def forward(self, x):
        kwargs = dict(task_windows=self.task_windows, heads=self.heads)
        if self._single_buffer_ok is None:
            try:
                outs = _forward_impl(x, self.w1, self.b1, self.wh, self.bh,
                                     single_buffer_weights=True, **kwargs)
                jax.block_until_ready(outs)
                self._single_buffer_ok = True
                return list(outs)
            except Exception:
                # pl.Buffered(1) not supported by this JAX/Mosaic build:
                # fall back to default (double) buffering of the weight blocks.
                self._single_buffer_ok = False
        outs = _forward_impl(x, self.w1, self.b1, self.wh, self.bh,
                             single_buffer_weights=self._single_buffer_ok,
                             **kwargs)
        return list(outs)

    def reference_forward(self, x):
        """Pure-JAX reference applying the same bf16 operand rounding."""
        batch = x.shape[0]
        xb = jnp.reshape(x, (batch, -1)).astype(jnp.bfloat16).astype(jnp.float32)
        w1 = self.w1[: self.din, : self.nhid].astype(jnp.float32)
        h = jnp.maximum(xb @ w1 + self.b1[:, : self.nhid], 0.0)
        hb = h.astype(jnp.bfloat16).astype(jnp.float32)
        outs = []
        for t, _ in self.taskcla:
            off, n = self.task_slices[t]
            wc = self.wh[: self.nhid, off:off + n].astype(jnp.float32)
            bc = self.bh[:, off:off + n]
            logits = hb @ wc + bc
            outs.append(jax.nn.log_softmax(logits, axis=1))
        return outs


# ---------------------------------- main -------------------------------------


if __name__ == "__main__":
    key = jax.random.PRNGKey(0)
    kx, kx2, kp = jax.random.split(key, 3)

    # Small shapes consistent with the module's forward:
    ncha = 4
    n_time_samples = 8
    n_observations = 2
    nhid = 32
    taskcla = [(0, 5), (1, 7)]   # two tasks with different class counts

    model = BayesianMLPPallas(ncha, n_time_samples, n_observations, nhid,
                              taskcla, kp)

    def check(x):
        ys = model.forward(x)
        jax.block_until_ready(ys)
        refs = model.reference_forward(x)
        assert len(ys) == len(model.heads)
        for y, r, (_, n) in zip(ys, refs, model.heads):
            assert y.shape == (x.shape[0], n), y.shape
            err = float(jnp.max(jnp.abs(y - r)))
            assert jnp.allclose(y, r, atol=1e-3, rtol=1e-3), err
            s = jnp.sum(jnp.exp(y), axis=1)     # log_softmax rows sum to 1
            assert jnp.allclose(s, jnp.ones_like(s), atol=1e-4), s

    # B=2: single batch tile, single K step.
    x1 = jax.random.normal(kx, (2, ncha, n_time_samples, n_observations),
                           jnp.float32)
    check(x1)

    # B=37: exercises a 2-step "parallel" batch grid plus a padded tail tile.
    x2 = jax.random.normal(kx2, (37, ncha, n_time_samples, n_observations),
                           jnp.float32)
    check(x2)

    print("KERNEL_OK")
</pallas_src>

<mosaic_0001>
module attributes {stable_mosaic.version = 11 : i64} {
  func.func @kernel(%arg0: i32, %arg1: i32, %arg2: memref<16x128xbf16, #tpu.memory_space<vmem>>, %arg3: memref<128x128xbf16, #tpu.memory_space<vmem>>, %arg4: memref<1x128xf32, #tpu.memory_space<vmem>>, %arg5: memref<128x128xbf16, #tpu.memory_space<vmem>>, %arg6: memref<1x128xf32, #tpu.memory_space<vmem>>, %arg7: memref<16x128xf32, #tpu.memory_space<vmem>>, %arg8: memref<16x128xf32, #tpu.memory_space<vmem>>) attributes {dimension_semantics = [#tpu.dimension_semantics<parallel>, #tpu.dimension_semantics<arbitrary>], iteration_bounds = array<i64: 1, 1>, scalar_prefetch = 0 : i64, scratch_operands = 1 : i64, tpu.core_type = #tpu.core_type<tc>, window_params = [{transform_indices = @transform_0, window_bounds = array<i64: 16, 128>}, {transform_indices = @transform_1, window_bounds = array<i64: 128, 128>}, {pipeline_mode = #tpu.pipeline_mode<synchronous>, transform_indices = @transform_2, window_bounds = array<i64: 1, 128>}, {pipeline_mode = #tpu.pipeline_mode<synchronous>, transform_indices = @transform_3, window_bounds = array<i64: 128, 128>}, {pipeline_mode = #tpu.pipeline_mode<synchronous>, transform_indices = @transform_4, window_bounds = array<i64: 1, 128>}, {transform_indices = @transform_5, window_bounds = array<i64: 16, 128>}]} {
    %c0_i32 = arith.constant 0 : i32
    %0 = arith.cmpi eq, %arg1, %c0_i32 : i32
    %1 = arith.extui %0 : i1 to i32
    %c0_i32_0 = arith.constant 0 : i32
    %2 = arith.cmpi ne, %1, %c0_i32_0 : i32
    scf.if %2 {
      %cst_10 = arith.constant 0.000000e+00 : f32
      %12 = vector.broadcast %cst_10 : f32 to vector<16x128xf32>
      %c0_11 = arith.constant 0 : index
      %c0_12 = arith.constant 0 : index
      %13 = vector.load %arg8[%c0_11, %c0_12] : memref<16x128xf32, #tpu.memory_space<vmem>>, vector<16x128xf32>
      tpu.vector_store %arg8[%c0_11, %c0_12], %12 {strides = array<i32>} : memref<16x128xf32, #tpu.memory_space<vmem>>, vector<16x128xf32>,
    } else {
    }
    %c0 = arith.constant 0 : index
    %c0_1 = arith.constant 0 : index
    %3 = vector.load %arg8[%c0, %c0_1] : memref<16x128xf32, #tpu.memory_space<vmem>>, vector<16x128xf32>
    %c0_2 = arith.constant 0 : index
    %c0_3 = arith.constant 0 : index
    %4 = vector.load %arg2[%c0_2, %c0_3] : memref<16x128xbf16, #tpu.memory_space<vmem>>, vector<16x128xbf16>
    %c0_4 = arith.constant 0 : index
    %c0_5 = arith.constant 0 : index
    %5 = vector.load %arg3[%c0_4, %c0_5] : memref<128x128xbf16, #tpu.memory_space<vmem>>, vector<128x128xbf16>
    %cst = arith.constant dense<0.000000e+00> : vector<16x128xf32>
    %6 = tpu.matmul %4, %5, %cst {dimension_numbers = #tpu.dot_dimension_numbers<[1], [0], [0], [1], [0, 0, 1, 1], [], []>} : vector<16x128xbf16>, vector<128x128xbf16>, vector<16x128xf32> -> vector<16x128xf32>
    %7 = arith.addf %3, %6 : vector<16x128xf32>
    %c0_6 = arith.constant 0 : index
    %c0_7 = arith.constant 0 : index
    %8 = vector.load %arg8[%c0_6, %c0_7] : memref<16x128xf32, #tpu.memory_space<vmem>>, vector<16x128xf32>
    tpu.vector_store %arg8[%c0_6, %c0_7], %7 {strides = array<i32>} : memref<16x128xf32, #tpu.memory_space<vmem>>, vector<16x128xf32>,
    %c0_i32_8 = arith.constant 0 : i32
    %9 = arith.cmpi eq, %arg1, %c0_i32_8 : i32
    %10 = arith.extui %9 : i1 to i32
    %c0_i32_9 = arith.constant 0 : i32
    %11 = arith.cmpi ne, %10, %c0_i32_9 : i32
    scf.if %11 {
      %c0_10 = arith.constant 0 : index
      %c0_11 = arith.constant 0 : index
      %12 = vector.load %arg8[%c0_10, %c0_11] : memref<16x128xf32, #tpu.memory_space<vmem>>, vector<16x128xf32>
      %c0_12 = arith.constant 0 : index
      %c0_13 = arith.constant 0 : index
      %13 = vector.load %arg4[%c0_12, %c0_13] : memref<1x128xf32, #tpu.memory_space<vmem>>, vector<1x128xf32>
      %14 = vector.broadcast %13 : vector<1x128xf32> to vector<16x128xf32>
      %15 = arith.addf %12, %14 : vector<16x128xf32>
      %cst_14 = arith.constant 0.000000e+00 : f32
      %16 = vector.broadcast %cst_14 : f32 to vector<16x128xf32>
      %17 = arith.maximumf %15, %16 : vector<16x128xf32>
      %18 = arith.truncf %17 : vector<16x128xf32> to vector<16x128xbf16>
      %c0_15 = arith.constant 0 : index
      %c0_16 = arith.constant 0 : index
      %19 = vector.load %arg5[%c0_15, %c0_16] : memref<128x128xbf16, #tpu.memory_space<vmem>>, vector<128x128xbf16>
      %cst_17 = arith.constant dense<0.000000e+00> : vector<16x128xf32>
      %20 = tpu.matmul %18, %19, %cst_17 {dimension_numbers = #tpu.dot_dimension_numbers<[1], [0], [0], [1], [0, 0, 1, 1], [], []>} : vector<16x128xbf16>, vector<128x128xbf16>, vector<16x128xf32> -> vector<16x128xf32>
      %c0_18 = arith.constant 0 : index
      %c0_19 = arith.constant 0 : index
      %21 = vector.load %arg6[%c0_18, %c0_19] : memref<1x128xf32, #tpu.memory_space<vmem>>, vector<1x128xf32>
      %22 = vector.broadcast %21 : vector<1x128xf32> to vector<16x128xf32>
      %23 = arith.addf %20, %22 : vector<16x128xf32>
      %24 = tpu.iota {dimensions = array<i32: 1>} : vector<16x128xi32>
      %c0_i32_20 = arith.constant 0 : i32
      %25 = vector.broadcast %c0_i32_20 : i32 to vector<16x128xi32>
      %26 = arith.cmpi sge, %24, %25 : vector<16x128xi32>
      %c5_i32 = arith.constant 5 : i32
      %27 = vector.broadcast %c5_i32 : i32 to vector<16x128xi32>
      %28 = arith.cmpi slt, %24, %27 : vector<16x128xi32>
      %29 = arith.andi %26, %28 : vector<16x128xi1>
      %cst_21 = arith.constant 0xFF800000 : f32
      %30 = vector.broadcast %cst_21 : f32 to vector<16x128xf32>
      %31 = arith.select %29, %23, %30 : vector<16x128xi1>, vector<16x128xf32>
      %cst_22 = arith.constant dense<0xFF800000> : vector<16xf32>
      %32 = vector.multi_reduction <maximumf>, %31, %cst_22 [1] : vector<16x128xf32> to vector<16xf32>
      %33 = vector.shape_cast %32 : vector<16xf32> to vector<16x1xf32>
      %34 = vector.broadcast %33 : vector<16x1xf32> to vector<16x128xf32>
      %35 = arith.subf %23, %34 : vector<16x128xf32>
      %cst_23 = arith.constant 0xFF800000 : f32
      %36 = vector.broadcast %cst_23 : f32 to vector<16x128xf32>
      %37 = arith.select %29, %35, %36 : vector<16x128xi1>, vector<16x128xf32>
      %38 = math.exp %37 : vector<16x128xf32>
      %cst_24 = arith.constant dense<0.000000e+00> : vector<16xf32>
      %39 = vector.multi_reduction <add>, %38, %cst_24 [1] : vector<16x128xf32> to vector<16xf32>
      %40 = vector.shape_cast %39 : vector<16xf32> to vector<16x1xf32>
      %41 = math.log %40 : vector<16x1xf32>
      %42 = vector.broadcast %41 : vector<16x1xf32> to vector<16x128xf32>
      %43 = arith.subf %35, %42 : vector<16x128xf32>
      %c0_25 = arith.constant 0 : index
      %c0_26 = arith.constant 0 : index
      %44 = vector.load %arg7[%c0_25, %c0_26] : memref<16x128xf32, #tpu.memory_space<vmem>>, vector<16x128xf32>
      tpu.vector_store %arg7[%c0_25, %c0_26], %43 {strides = array<i32>} : memref<16x128xf32, #tpu.memory_space<vmem>>, vector<16x128xf32>,
      %45 = tpu.iota {dimensions = array<i32: 1>} : vector<16x128xi32>
      %c5_i32_27 = arith.constant 5 : i32
      %46 = vector.broadcast %c5_i32_27 : i32 to vector<16x128xi32>
      %47 = arith.cmpi sge, %45, %46 : vector<16x128xi32>
      %c12_i32 = arith.constant 12 : i32
      %48 = vector.broadcast %c12_i32 : i32 to vector<16x128xi32>
      %49 = arith.cmpi slt, %45, %48 : vector<16x128xi32>
      %50 = arith.andi %47, %49 : vector<16x128xi1>
      %cst_28 = arith.constant 0xFF800000 : f32
      %51 = vector.broadcast %cst_28 : f32 to vector<16x128xf32>
      %52 = arith.select %50, %23, %51 : vector<16x128xi1>, vector<16x128xf32>
      %cst_29 = arith.constant dense<0xFF800000> : vector<16xf32>
      %53 = vector.multi_reduction <maximumf>, %52, %cst_29 [1] : vector<16x128xf32> to vector<16xf32>
      %54 = vector.shape_cast %53 : vector<16xf32> to vector<16x1xf32>
      %55 = vector.broadcast %54 : vector<16x1xf32> to vector<16x128xf32>
      %56 = arith.subf %23, %55 : vector<16x128xf32>
      %cst_30 = arith.constant 0xFF800000 : f32
      %57 = vector.broadcast %cst_30 : f32 to vector<16x128xf32>
      %58 = arith.select %50, %56, %57 : vector<16x128xi1>, vector<16x128xf32>
      %59 = math.exp %58 : vector<16x128xf32>
      %cst_31 = arith.constant dense<0.000000e+00> : vector<16xf32>
      %60 = vector.multi_reduction <add>, %59, %cst_31 [1] : vector<16x128xf32> to vector<16xf32>
      %61 = vector.shape_cast %60 : vector<16xf32> to vector<16x1xf32>
      %62 = math.log %61 : vector<16x1xf32>
      %63 = vector.broadcast %62 : vector<16x1xf32> to vector<16x128xf32>
      %64 = arith.subf %56, %63 : vector<16x128xf32>
      %c0_32 = arith.constant 0 : index
      %c0_33 = arith.constant 0 : index
      %65 = vector.load %arg7[%c0_32, %c0_33] : memref<16x128xf32, #tpu.memory_space<vmem>>, vector<16x128xf32>
      %66 = arith.select %50, %64, %65 : vector<16x128xi1>, vector<16x128xf32>
      %c0_34 = arith.constant 0 : index
      %c0_35 = arith.constant 0 : index
      %67 = vector.load %arg7[%c0_34, %c0_35] : memref<16x128xf32, #tpu.memory_space<vmem>>, vector<16x128xf32>
      tpu.vector_store %arg7[%c0_34, %c0_35], %66 {strides = array<i32>} : memref<16x128xf32, #tpu.memory_space<vmem>>, vector<16x128xf32>,
    } else {
    }
    return
  }
  func.func @transform_0(%arg0: i32, %arg1: i32) -> (i32, i32) {
    %c0_i32 = arith.constant 0 : i32
    return %arg0, %arg1 : i32, i32
  }
  func.func @transform_1(%arg0: i32, %arg1: i32) -> (i32, i32) {
    %c0_i32 = arith.constant 0 : i32
    %c0_i32_0 = arith.constant 0 : i32
    return %arg1, %c0_i32 : i32, i32
  }
  func.func @transform_2(%arg0: i32, %arg1: i32) -> (i32, i32) {
    %c0_i32 = arith.constant 0 : i32
    %c0_i32_0 = arith.constant 0 : i32
    %c0_i32_1 = arith.constant 0 : i32
    return %c0_i32, %c0_i32_0 : i32, i32
  }
  func.func @transform_3(%arg0: i32, %arg1: i32) -> (i32, i32) {
    %c0_i32 = arith.constant 0 : i32
    %c0_i32_0 = arith.constant 0 : i32
    %c0_i32_1 = arith.constant 0 : i32
    return %c0_i32, %c0_i32_0 : i32, i32
  }
  func.func @transform_4(%arg0: i32, %arg1: i32) -> (i32, i32) {
    %c0_i32 = arith.constant 0 : i32
    %c0_i32_0 = arith.constant 0 : i32
    %c0_i32_1 = arith.constant 0 : i32
    return %c0_i32, %c0_i32_0 : i32, i32
  }
  func.func @transform_5(%arg0: i32, %arg1: i32) -> (i32, i32) {
    %c0_i32 = arith.constant 0 : i32
    %c0_i32_0 = arith.constant 0 : i32
    return %arg0, %c0_i32 : i32, i32
  }
}

module attributes {stable_mosaic.version = 11 : i64} {
  func.func @kernel(%arg0: i32, %arg1: i32, %arg2: memref<16x128xbf16, #tpu.memory_space<vmem>>, %arg3: memref<128x128xbf16, #tpu.memory_space<vmem>>, %arg4: memref<1x128xf32, #tpu.memory_space<vmem>>, %arg5: memref<128x128xbf16, #tpu.memory_space<vmem>>, %arg6: memref<1x128xf32, #tpu.memory_space<vmem>>, %arg7: memref<16x128xf32, #tpu.memory_space<vmem>>, %arg8: memref<16x128xf32, #tpu.memory_space<vmem>>) attributes {dimension_semantics = [#tpu.dimension_semantics<parallel>, #tpu.dimension_semantics<arbitrary>], iteration_bounds = array<i64: 1, 1>, scalar_prefetch = 0 : i64, scratch_operands = 1 : i64, tpu.core_type = #tpu.core_type<tc>, window_params = [{transform_indices = @transform_0, window_bounds = array<i64: 16, 128>}, {transform_indices = @transform_1, window_bounds = array<i64: 128, 128>}, {pipeline_mode = #tpu.pipeline_mode<synchronous>, transform_indices = @transform_2, window_bounds = array<i64: 1, 128>}, {pipeline_mode = #tpu.pipeline_mode<synchronous>, transform_indices = @transform_3, window_bounds = array<i64: 128, 128>}, {pipeline_mode = #tpu.pipeline_mode<synchronous>, transform_indices = @transform_4, window_bounds = array<i64: 1, 128>}, {transform_indices = @transform_5, window_bounds = array<i64: 16, 128>}]} {
    %c0_i32 = arith.constant 0 : i32
    %0 = arith.cmpi eq, %arg1, %c0_i32 : i32
    %1 = arith.extui %0 : i1 to i32
    %c0_i32_0 = arith.constant 0 : i32
    %2 = arith.cmpi ne, %1, %c0_i32_0 : i32
    scf.if %2 {
      %cst_10 = arith.constant 0.000000e+00 : f32
      %12 = vector.broadcast %cst_10 : f32 to vector<16x128xf32>
      %c0_11 = arith.constant 0 : index
      %c0_12 = arith.constant 0 : index
      %13 = vector.load %arg8[%c0_11, %c0_12] : memref<16x128xf32, #tpu.memory_space<vmem>>, vector<16x128xf32>
      tpu.vector_store %arg8[%c0_11, %c0_12], %12 {strides = array<i32>} : memref<16x128xf32, #tpu.memory_space<vmem>>, vector<16x128xf32>,
    } else {
    }
    %c0 = arith.constant 0 : index
    %c0_1 = arith.constant 0 : index
    %3 = vector.load %arg8[%c0, %c0_1] : memref<16x128xf32, #tpu.memory_space<vmem>>, vector<16x128xf32>
    %c0_2 = arith.constant 0 : index
    %c0_3 = arith.constant 0 : index
    %4 = vector.load %arg2[%c0_2, %c0_3] : memref<16x128xbf16, #tpu.memory_space<vmem>>, vector<16x128xbf16>
    %c0_4 = arith.constant 0 : index
    %c0_5 = arith.constant 0 : index
    %5 = vector.load %arg3[%c0_4, %c0_5] : memref<128x128xbf16, #tpu.memory_space<vmem>>, vector<128x128xbf16>
    %cst = arith.constant dense<0.000000e+00> : vector<16x128xf32>
    %6 = tpu.matmul %4, %5, %cst {dimension_numbers = #tpu.dot_dimension_numbers<[1], [0], [0], [1], [0, 0, 1, 1], [], []>} : vector<16x128xbf16>, vector<128x128xbf16>, vector<16x128xf32> -> vector<16x128xf32>
    %7 = arith.addf %3, %6 : vector<16x128xf32>
    %c0_6 = arith.constant 0 : index
    %c0_7 = arith.constant 0 : index
    %8 = vector.load %arg8[%c0_6, %c0_7] : memref<16x128xf32, #tpu.memory_space<vmem>>, vector<16x128xf32>
    tpu.vector_store %arg8[%c0_6, %c0_7], %7 {strides = array<i32>} : memref<16x128xf32, #tpu.memory_space<vmem>>, vector<16x128xf32>,
    %c0_i32_8 = arith.constant 0 : i32
    %9 = arith.cmpi eq, %arg1, %c0_i32_8 : i32
    %10 = arith.extui %9 : i1 to i32
    %c0_i32_9 = arith.constant 0 : i32
    %11 = arith.cmpi ne, %10, %c0_i32_9 : i32
    scf.if %11 {
      %c0_10 = arith.constant 0 : index
      %c0_11 = arith.constant 0 : index
      %12 = vector.load %arg8[%c0_10, %c0_11] : memref<16x128xf32, #tpu.memory_space<vmem>>, vector<16x128xf32>
      %c0_12 = arith.constant 0 : index
      %c0_13 = arith.constant 0 : index
      %13 = vector.load %arg4[%c0_12, %c0_13] : memref<1x128xf32, #tpu.memory_space<vmem>>, vector<1x128xf32>
      %14 = vector.broadcast %13 : vector<1x128xf32> to vector<16x128xf32>
      %15 = arith.addf %12, %14 : vector<16x128xf32>
      %cst_14 = arith.constant 0.000000e+00 : f32
      %16 = vector.broadcast %cst_14 : f32 to vector<16x128xf32>
      %17 = arith.maximumf %15, %16 : vector<16x128xf32>
      %18 = arith.truncf %17 : vector<16x128xf32> to vector<16x128xbf16>
      %c0_15 = arith.constant 0 : index
      %c0_16 = arith.constant 0 : index
      %19 = vector.load %arg5[%c0_15, %c0_16] : memref<128x128xbf16, #tpu.memory_space<vmem>>, vector<128x128xbf16>
      %cst_17 = arith.constant dense<0.000000e+00> : vector<16x128xf32>
      %20 = tpu.matmul %18, %19, %cst_17 {dimension_numbers = #tpu.dot_dimension_numbers<[1], [0], [0], [1], [0, 0, 1, 1], [], []>} : vector<16x128xbf16>, vector<128x128xbf16>, vector<16x128xf32> -> vector<16x128xf32>
      %c0_18 = arith.constant 0 : index
      %c0_19 = arith.constant 0 : index
      %21 = vector.load %arg6[%c0_18, %c0_19] : memref<1x128xf32, #tpu.memory_space<vmem>>, vector<1x128xf32>
      %22 = vector.broadcast %21 : vector<1x128xf32> to vector<16x128xf32>
      %23 = arith.addf %20, %22 : vector<16x128xf32>
      %24 = tpu.iota {dimensions = array<i32: 1>} : vector<16x128xi32>
      %c0_i32_20 = arith.constant 0 : i32
      %25 = vector.broadcast %c0_i32_20 : i32 to vector<16x128xi32>
      %26 = arith.cmpi sge, %24, %25 : vector<16x128xi32>
      %c5_i32 = arith.constant 5 : i32
      %27 = vector.broadcast %c5_i32 : i32 to vector<16x128xi32>
      %28 = arith.cmpi slt, %24, %27 : vector<16x128xi32>
      %29 = arith.andi %26, %28 : vector<16x128xi1>
      %cst_21 = arith.constant 0xFF800000 : f32
      %30 = vector.broadcast %cst_21 : f32 to vector<16x128xf32>
      %31 = arith.select %29, %23, %30 : vector<16x128xi1>, vector<16x128xf32>
      %cst_22 = arith.constant dense<0xFF800000> : vector<16xf32>
      %32 = vector.multi_reduction <maximumf>, %31, %cst_22 [1] : vector<16x128xf32> to vector<16xf32>
      %33 = vector.shape_cast %32 : vector<16xf32> to vector<16x1xf32>
      %34 = vector.broadcast %33 : vector<16x1xf32> to vector<16x128xf32>
      %35 = arith.subf %23, %34 : vector<16x128xf32>
      %cst_23 = arith.constant 0xFF800000 : f32
      %36 = vector.broadcast %cst_23 : f32 to vector<16x128xf32>
      %37 = arith.select %29, %35, %36 : vector<16x128xi1>, vector<16x128xf32>
      %38 = math.exp %37 : vector<16x128xf32>
      %cst_24 = arith.constant dense<0.000000e+00> : vector<16xf32>
      %39 = vector.multi_reduction <add>, %38, %cst_24 [1] : vector<16x128xf32> to vector<16xf32>
      %40 = vector.shape_cast %39 : vector<16xf32> to vector<16x1xf32>
      %41 = math.log %40 : vector<16x1xf32>
      %42 = vector.broadcast %41 : vector<16x1xf32> to vector<16x128xf32>
      %43 = arith.subf %35, %42 : vector<16x128xf32>
      %c0_25 = arith.constant 0 : index
      %c0_26 = arith.constant 0 : index
      %44 = vector.load %arg7[%c0_25, %c0_26] : memref<16x128xf32, #tpu.memory_space<vmem>>, vector<16x128xf32>
      tpu.vector_store %arg7[%c0_25, %c0_26], %43 {strides = array<i32>} : memref<16x128xf32, #tpu.memory_space<vmem>>, vector<16x128xf32>,
      %45 = tpu.iota {dimensions = array<i32: 1>} : vector<16x128xi32>
      %c5_i32_27 = arith.constant 5 : i32
      %46 = vector.broadcast %c5_i32_27 : i32 to vector<16x128xi32>
      %47 = arith.cmpi sge, %45, %46 : vector<16x128xi32>
      %c12_i32 = arith.constant 12 : i32
      %48 = vector.broadcast %c12_i32 : i32 to vector<16x128xi32>
      %49 = arith.cmpi slt, %45, %48 : vector<16x128xi32>
      %50 = arith.andi %47, %49 : vector<16x128xi1>
      %cst_28 = arith.constant 0xFF800000 : f32
      %51 = vector.broadcast %cst_28 : f32 to vector<16x128xf32>
      %52 = arith.select %50, %23, %51 : vector<16x128xi1>, vector<16x128xf32>
      %cst_29 = arith.constant dense<0xFF800000> : vector<16xf32>
      %53 = vector.multi_reduction <maximumf>, %52, %cst_29 [1] : vector<16x128xf32> to vector<16xf32>
      %54 = vector.shape_cast %53 : vector<16xf32> to vector<16x1xf32>
      %55 = vector.broadcast %54 : vector<16x1xf32> to vector<16x128xf32>
      %56 = arith.subf %23, %55 : vector<16x128xf32>
      %cst_30 = arith.constant 0xFF800000 : f32
      %57 = vector.broadcast %cst_30 : f32 to vector<16x128xf32>
      %58 = arith.select %50, %56, %57 : vector<16x128xi1>, vector<16x128xf32>
      %59 = math.exp %58 : vector<16x128xf32>
      %cst_31 = arith.constant dense<0.000000e+00> : vector<16xf32>
      %60 = vector.multi_reduction <add>, %59, %cst_31 [1] : vector<16x128xf32> to vector<16xf32>
      %61 = vector.shape_cast %60 : vector<16xf32> to vector<16x1xf32>
      %62 = math.log %61 : vector<16x1xf32>
      %63 = vector.broadcast %62 : vector<16x1xf32> to vector<16x128xf32>
      %64 = arith.subf %56, %63 : vector<16x128xf32>
      %c0_32 = arith.constant 0 : index
      %c0_33 = arith.constant 0 : index
      %65 = vector.load %arg7[%c0_32, %c0_33] : memref<16x128xf32, #tpu.memory_space<vmem>>, vector<16x128xf32>
      %66 = arith.select %50, %64, %65 : vector<16x128xi1>, vector<16x128xf32>
      %c0_34 = arith.constant 0 : index
      %c0_35 = arith.constant 0 : index
      %67 = vector.load %arg7[%c0_34, %c0_35] : memref<16x128xf32, #tpu.memory_space<vmem>>, vector<16x128xf32>
      tpu.vector_store %arg7[%c0_34, %c0_35], %66 {strides = array<i32>} : memref<16x128xf32, #tpu.memory_space<vmem>>, vector<16x128xf32>,
    } else {
    }
    return
  }
  func.func @transform_0(%arg0: i32, %arg1: i32) -> (i32, i32) {
    %c0_i32 = arith.constant 0 : i32
    return %arg0, %arg1 : i32, i32
  }
  func.func @transform_1(%arg0: i32, %arg1: i32) -> (i32, i32) {
    %c0_i32 = arith.constant 0 : i32
    %c0_i32_0 = arith.constant 0 : i32
    return %arg1, %c0_i32 : i32, i32
  }
  func.func @transform_2(%arg0: i32, %arg1: i32) -> (i32, i32) {
    %c0_i32 = arith.constant 0 : i32
    %c0_i32_0 = arith.constant 0 : i32
    %c0_i32_1 = arith.constant 0 : i32
    return %c0_i32, %c0_i32_0 : i32, i32
  }
  func.func @transform_3(%arg0: i32, %arg1: i32) -> (i32, i32) {
    %c0_i32 = arith.constant 0 : i32
    %c0_i32_0 = arith.constant 0 : i32
    %c0_i32_1 = arith.constant 0 : i32
    return %c0_i32, %c0_i32_0 : i32, i32
  }
  func.func @transform_4(%arg0: i32, %arg1: i32) -> (i32, i32) {
    %c0_i32 = arith.constant 0 : i32
    %c0_i32_0 = arith.constant 0 : i32
    %c0_i32_1 = arith.constant 0 : i32
    return %c0_i32, %c0_i32_0 : i32, i32
  }
  func.func @transform_5(%arg0: i32, %arg1: i32) -> (i32, i32) {
    %c0_i32 = arith.constant 0 : i32
    %c0_i32_0 = arith.constant 0 : i32
    return %arg0, %c0_i32 : i32, i32
  }
}

</mosaic_0001>

<llo_original>
// kernel: _forward_impl.1
$region0: #{_forward_impl.1}
  #allocation0 [shape = 'u32[]', space=smem, size = 0x4, offset = 0x4, fixed_abs, tag = 'smem constant byte address 0x4 - core index']
  #allocation1 [shape = 'u32[144,128]{1,0:T(1,128)}', space=vmem, size = 0x12000, scoped, tag = 'internal scratch']
  #allocation2 [shape = 'f32[16,128]{1,0:T(8,128)}', space=vmem, size = 0x2000, scoped, tag = 'scratch operand']
  %s0 = inlined_call_operand.vmem [shape: bf16[16,128], index: 0, kind: input, shape index: {}]
  %s1 = inlined_call_operand.vmem [shape: bf16[128,128], index: 1, kind: input, shape index: {}]
  %s2 = inlined_call_operand.vmem [shape: f32[1,128], index: 2, kind: input, shape index: {}]
  %s3 = inlined_call_operand.hbm [shape: bf16[128,128], index: 3, kind: input, shape index: {}]
  %s4 = inlined_call_operand.vmem [shape: f32[1,128], index: 4, kind: input, shape index: {}]
  %s5 = inlined_call_operand.vmem [shape: f32[16,128], index: 5, kind: output, shape index: {}]
  %s6 = sld [smem:[#allocation0]]
  $region42: #{_forward_impl.1} parent=0
    _
  %s8 = ssub.s32 1, %s6
  %s9 = scalar_select 0, %s8, %s6
  $region1: #{_forward_impl.1} parent=0
    #allocation3 [shape = 'u8[32768]{0}', space=vmem, size = 0x8000, scoped, tag = 'input window, operand 3, single buffered']
    #allocation4 [shape = 's32[1]{0}', space=sflag, size = 0x4, scoped, tag = 'scoped memory for _forward_impl.1']
    %10 = vsyncpa [#allocation4], 0
    // Predicated region
    $region2: #{_forward_impl.1} parent=1 // pred_check
      _
    $region3: #{_forward_impl.1} parent=1 // pred_check_branch
      %12 = sbr.rel (0) target = $region5
    $region4: #{_forward_impl.1} parent=1 // pred_region
      _
    $region5: #{_forward_impl.1} parent=1 // pred_fallthru
      _
    // Predicated region
    $region6: #{_forward_impl.1} parent=1 // pred_check
      _
    $region7: #{_forward_impl.1} parent=1 // pred_check_branch
      %14 = sbr.rel (0) target = $region9
    $region8: #{_forward_impl.1} parent=1 // pred_region
      _
    $region9: #{_forward_impl.1} parent=1 // pred_fallthru
      _
    // Predicated region
    $region10: #{_forward_impl.1} parent=1 // pred_check
      _
    $region11: #{_forward_impl.1} parent=1 // pred_check_branch
      %16 = sbr.rel (0) target = $region13
    $region12: #{_forward_impl.1} parent=1 // pred_region
      _
    $region13: #{_forward_impl.1} parent=1 // pred_fallthru
      _
    // Predicated region
    $region14: #{_forward_impl.1} parent=1 // pred_check
      _
    $region15: #{_forward_impl.1} parent=1 // pred_check_branch
      %18 = sbr.rel (0) target = $region17
    $region16: #{_forward_impl.1} parent=1 // pred_region
      %s20 = ssub.s32 1024, 1024
      %21 = vsyncadd [#allocation4], %s20
      %s22 = sshll.u32 [#allocation3], 4
      %s23 = int_to_ptr.vmem [resolvable:$true] %s22
      %28 = dma.hbm_to_vmem [thread:$0]  %s3, 1024, %s23, [#allocation4], 64, 64, 4
    $region17: #{_forward_impl.1} parent=1 // pred_fallthru
      _
    // Predicated region
    $region18: #{_forward_impl.1} parent=1 // pred_check
      _
    $region19: #{_forward_impl.1} parent=1 // pred_check_branch
      %30 = sbr.rel (0) target = $region21
    $region20: #{_forward_impl.1} parent=1 // pred_region
      _
    $region21: #{_forward_impl.1} parent=1 // pred_fallthru
      _
    // Predicated region
    $region22: #{_forward_impl.1} parent=1 // pred_check
      _
    $region23: #{_forward_impl.1} parent=1 // pred_check_branch
      %32 = sbr.rel (0) target = $region25
    $region24: #{_forward_impl.1} parent=1 // pred_region
      %33 = dma.done [#allocation4], 1024
    $region25: #{_forward_impl.1} parent=1 // pred_fallthru
      _
    %p35 = scmp.eq.s32.totalorder 0, 0
    // Predicated region
    $region26: #{_forward_impl.1} parent=1 // pred_check
      %p36 = pneg %p35
    $region27: #{_forward_impl.1} parent=1 // pred_check_branch
      %38 = sbr.rel (%p36) target = $region29
    $region28: #{_forward_impl.1} parent=1 // pred_region
      %39 = vst [vmem:[#allocation2] sm:$0xff] 0.0
      %40 = vst [vmem:[#allocation2 + $0x8] sm:$0xff] 0.0
    $region29: #{_forward_impl.1} parent=1 // pred_fallthru
      _
    %v41 = vld [vmem:[#allocation2] sm:$0xff]
    %v42 = vld [vmem:[#allocation2 + $0x8] sm:$0xff]
    %v43 = vld [vmem:[%s0] sm:$0xf]
    %v44 = vld [vmem:[%s0 + $0x4] sm:$0xf]
    %v45 = vld [vmem:[%s1] sm:$0xf]
    %v46 = vld [vmem:[%s1 + $0x4] sm:$0xf]
    %v47 = vld [vmem:[%s1 + $0x8] sm:$0xf]
    %v48 = vld [vmem:[%s1 + $0xc] sm:$0xf]
    %v49 = vld [vmem:[%s1 + $0x10] sm:$0xf]
    %v50 = vld [vmem:[%s1 + $0x14] sm:$0xf]
    %v51 = vld [vmem:[%s1 + $0x18] sm:$0xf]
    %v52 = vld [vmem:[%s1 + $0x1c] sm:$0xf]
    %v53 = vld [vmem:[%s1 + $0x20] sm:$0xf]
    %v54 = vld [vmem:[%s1 + $0x24] sm:$0xf]
    %v55 = vld [vmem:[%s1 + $0x28] sm:$0xf]
    %v56 = vld [vmem:[%s1 + $0x2c] sm:$0xf]
    %v57 = vld [vmem:[%s1 + $0x30] sm:$0xf]
    %v58 = vld [vmem:[%s1 + $0x34] sm:$0xf]
    %v59 = vld [vmem:[%s1 + $0x38] sm:$0xf]
    %v60 = vld [vmem:[%s1 + $0x3c] sm:$0xf]
    %v63 = vunpack.c.l.b16 %v43
    %v64 = vunpack.c.l.b16 %v44
    %v65 = vpack.c.b16 %v64, %v63
    %v83 = vunpack.c.l.b16 %v45
    %v84 = vunpack.c.l.b16 %v46
    %v85 = vunpack.c.l.b16 %v47
    %v86 = vunpack.c.l.b16 %v48
    %v87 = vunpack.c.l.b16 %v49
    %v88 = vunpack.c.l.b16 %v50
    %v89 = vunpack.c.l.b16 %v51
    %v90 = vunpack.c.l.b16 %v52
    %v91 = vunpack.c.l.b16 %v53
    %v92 = vunpack.c.l.b16 %v54
    %v93 = vunpack.c.l.b16 %v55
    %v94 = vunpack.c.l.b16 %v56
    %v95 = vunpack.c.l.b16 %v57
    %v96 = vunpack.c.l.b16 %v58
    %v97 = vunpack.c.l.b16 %v59
    %v98 = vunpack.c.l.b16 %v60
    %v99 = vpack.c.b16 %v84, %v83
    %v100 = vpack.c.b16 %v86, %v85
    %v101 = vpack.c.b16 %v88, %v87
    %v102 = vpack.c.b16 %v90, %v89
    %v103 = vpack.c.b16 %v92, %v91
    %v104 = vpack.c.b16 %v94, %v93
    %v105 = vpack.c.b16 %v96, %v95
    %v106 = vpack.c.b16 %v98, %v97
    %115 = vmatprep.subr.bf16.mxu0 0
    %116 = vmatpush1.bf16.msra.mxu0 %v99
    %117 = vmatprep.subr.bf16.mxu0 0
    %118 = vmatpush1.bf16.msra.mxu0 %v100
    %119 = vmatprep.subr.bf16.mxu0 0
    %120 = vmatpush1.bf16.msra.mxu0 %v101
    %121 = vmatprep.subr.bf16.mxu0 0
    %122 = vmatpush1.bf16.msra.mxu0 %v102
    %123 = vmatprep.subr.bf16.mxu0 0
    %124 = vmatpush1.bf16.msra.mxu0 %v103
    %125 = vmatprep.subr.bf16.mxu0 0
    %126 = vmatpush1.bf16.msra.mxu0 %v104
    %127 = vmatprep.subr.bf16.mxu0 0
    %128 = vmatpush1.bf16.msra.mxu0 %v105
    %129 = vmatprep.subr.bf16.mxu0 0
    %130 = vmatpush1.bf16.msra.mxu0 %v106
    %131 = vmatprep.subr.bf16.mxu0 0
    %132 = vmatpush1.bf16.msra.mxu0 0
    %133 = vmatprep.subr.bf16.mxu0 0
    %134 = vmatpush1.bf16.msra.mxu0 0
    %135 = vmatprep.subr.bf16.mxu0 0
    %136 = vmatpush1.bf16.msra.mxu0 0
    %137 = vmatprep.subr.bf16.mxu0 0
    %138 = vmatpush1.bf16.msra.mxu0 0
    %139 = vmatprep.subr.bf16.mxu0 0
    %140 = vmatpush1.bf16.msra.mxu0 0
    %141 = vmatprep.subr.bf16.mxu0 0
    %142 = vmatpush1.bf16.msra.mxu0 0
    %143 = vmatprep.subr.bf16.mxu0 0
    %144 = vmatpush1.bf16.msra.mxu0 0
    %145 = vmatprep.subr.bf16.mxu0 0
    %146 = vmatpush1.bf16.msra.mxu0 0
    %147 = vmatprep.mubr.bf16.mxu0 0
    %148 = vmatmul.mubr.bf16.gmra.mrb[0].mxu0 %v65
    %v149 = vpop.f32.mrb[0].mxu0
    %v150 = vadd.f32 0.0, %v149
    %v151 = vpop.f32.mrb[0].mxu0
    %v152 = vpop.f32.mrb[0].mxu0
    %v153 = vadd.f32 0.0, %v152
    %v154 = vpop.f32.mrb[0].mxu0
    %155 = vdwg.mxu0
    %v156 = vadd.f32 %v41, %v150
    %v157 = vadd.f32 %v42, %v153
    %158 = vst [vmem:[#allocation2] sm:$0xff] %v156
    %159 = vst [vmem:[#allocation2 + $0x8] sm:$0xff] %v157
    // Predicated region
    $region30: #{_forward_impl.1} parent=1 // pred_check
      %p160 = pneg %p35
    $region31: #{_forward_impl.1} parent=1 // pred_check_branch
      %162 = sbr.rel (%p160) target = $region33
    $region32: #{_forward_impl.1} parent=1 // pred_region
      %v163 = vld [vmem:[#allocation2] sm:$0xff]
      %v164 = vld [vmem:[#allocation2 + $0x8] sm:$0xff]
      %v165 = vld [vmem:[%s2] sm:$0x1]
      %v167 = vlaneseq
      %v168 = vshrl.u32 %v167, 7
      %v169 = vsub.s32 0, %v168
      %v170 = vrot.slane %v165, %v169
      %v172 = vadd.f32 %v163, %v170
      %v173 = vadd.f32 %v164, %v170
      %v174 = vmax.f32 %v172, 0.0
      %v175 = vmax.f32 %v173, 0.0
      %v176 = vpack.c.bf16 %v175, %v174
      %v177 = vld [vmem:[#allocation3] sm:$0xf]
      %v178 = vld [vmem:[#allocation3 + $0x4] sm:$0xf]
      %v179 = vld [vmem:[#allocation3 + $0x8] sm:$0xf]
      %v180 = vld [vmem:[#allocation3 + $0xc] sm:$0xf]
      %v181 = vld [vmem:[#allocation3 + $0x10] sm:$0xf]
      %v182 = vld [vmem:[#allocation3 + $0x14] sm:$0xf]
      %v183 = vld [vmem:[#allocation3 + $0x18] sm:$0xf]
      %v184 = vld [vmem:[#allocation3 + $0x1c] sm:$0xf]
      %v185 = vld [vmem:[#allocation3 + $0x20] sm:$0xf]
      %v186 = vld [vmem:[#allocation3 + $0x24] sm:$0xf]
      %v187 = vld [vmem:[#allocation3 + $0x28] sm:$0xf]
      %v188 = vld [vmem:[#allocation3 + $0x2c] sm:$0xf]
      %v189 = vld [vmem:[#allocation3 + $0x30] sm:$0xf]
      %v190 = vld [vmem:[#allocation3 + $0x34] sm:$0xf]
      %v191 = vld [vmem:[#allocation3 + $0x38] sm:$0xf]
      %v192 = vld [vmem:[#allocation3 + $0x3c] sm:$0xf]
      %v193 = vld [vmem:[%s4] sm:$0x1]
      %v195 = vlaneseq
      %v196 = vshrl.u32 %v195, 7
      %v197 = vsub.s32 0, %v196
      %v198 = vrot.slane %v193, %v197
      %v216 = vunpack.c.l.b16 %v177
      %v217 = vunpack.c.l.b16 %v178
      %v218 = vunpack.c.l.b16 %v179
      %v219 = vunpack.c.l.b16 %v180
      %v220 = vunpack.c.l.b16 %v181
      %v221 = vunpack.c.l.b16 %v182
      %v222 = vunpack.c.l.b16 %v183
      %v223 = vunpack.c.l.b16 %v184
      %v224 = vunpack.c.l.b16 %v185
      %v225 = vunpack.c.l.b16 %v186
      %v226 = vunpack.c.l.b16 %v187
      %v227 = vunpack.c.l.b16 %v188
      %v228 = vunpack.c.l.b16 %v189
      %v229 = vunpack.c.l.b16 %v190
      %v230 = vunpack.c.l.b16 %v191
      %v231 = vunpack.c.l.b16 %v192
      %v232 = vpack.c.b16 %v217, %v216
      %v233 = vpack.c.b16 %v219, %v218
      %v234 = vpack.c.b16 %v221, %v220
      %v235 = vpack.c.b16 %v223, %v222
      %v236 = vpack.c.b16 %v225, %v224
      %v237 = vpack.c.b16 %v227, %v226
      %v238 = vpack.c.b16 %v229, %v228
      %v239 = vpack.c.b16 %v231, %v230
      %248 = vmatprep.subr.bf16.mxu0 0
      %249 = vmatpush1.bf16.msra.mxu0 %v232
      %250 = vmatprep.subr.bf16.mxu0 0
      %251 = vmatpush1.bf16.msra.mxu0 %v233
      %252 = vmatprep.subr.bf16.mxu0 0
      %253 = vmatpush1.bf16.msra.mxu0 %v234
      %254 = vmatprep.subr.bf16.mxu0 0
      %255 = vmatpush1.bf16.msra.mxu0 %v235
      %256 = vmatprep.subr.bf16.mxu0 0
      %257 = vmatpush1.bf16.msra.mxu0 %v236
      %258 = vmatprep.subr.bf16.mxu0 0
      %259 = vmatpush1.bf16.msra.mxu0 %v237
      %260 = vmatprep.subr.bf16.mxu0 0
      %261 = vmatpush1.bf16.msra.mxu0 %v238
      %262 = vmatprep.subr.bf16.mxu0 0
      %263 = vmatpush1.bf16.msra.mxu0 %v239
      %264 = vmatprep.subr.bf16.mxu0 0
      %265 = vmatpush1.bf16.msra.mxu0 0
      %266 = vmatprep.subr.bf16.mxu0 0
      %267 = vmatpush1.bf16.msra.mxu0 0
      %268 = vmatprep.subr.bf16.mxu0 0
      %269 = vmatpush1.bf16.msra.mxu0 0
      %270 = vmatprep.subr.bf16.mxu0 0
      %271 = vmatpush1.bf16.msra.mxu0 0
      %272 = vmatprep.subr.bf16.mxu0 0
      %273 = vmatpush1.bf16.msra.mxu0 0
      %274 = vmatprep.subr.bf16.mxu0 0
      %275 = vmatpush1.bf16.msra.mxu0 0
      %276 = vmatprep.subr.bf16.mxu0 0
      %277 = vmatpush1.bf16.msra.mxu0 0
      %278 = vmatprep.subr.bf16.mxu0 0
      %279 = vmatpush1.bf16.msra.mxu0 0
      %280 = vmatprep.mubr.bf16.mxu0 0
      %281 = vmatmul.mubr.bf16.gmra.mrb[0].mxu0 %v176
      %v282 = vpop.f32.mrb[0].mxu0
      %v283 = vadd.f32 %v198, %v282
      %v284 = vpop.f32.mrb[0].mxu0
      %v285 = vpop.f32.mrb[0].mxu0
      %v286 = vadd.f32 %v198, %v285
      %v287 = vpop.f32.mrb[0].mxu0
      %288 = vdwg.mxu0
      %v289 = vlaneseq
      %v290 = vand.u32 %v289, 127
      %vm291 = vcmp.ge.s32.totalorder %v290, 0
      %vm292 = vcmp.lt.s32.totalorder %v290, 5
      %vm293 = vmand %vm291, %vm292
      %v294 = vsel %vm293, %v283, -inf
      %v295 = vsel %vm293, %v286, -inf
      %296 = vmax.xlane.f32.xlu0 %v294
      %v297 = vpop.xlane.xlu0 %296
      %298 = vmax.xlane.f32.xlu0 %v295
      %v299 = vpop.xlane.xlu0 %298
      %v300 = vsub.f32 %v283, %v297
      %v301 = vsub.f32 %v286, %v299
      %v302 = vsel %vm293, %v300, -inf
      %v303 = vsel %vm293, %v301, -inf
      %v304 = vmul.f32 %v302, 1.442695
      %v305 = vpow.pop %v304
      %v306 = vmul.f32 %v303, 1.442695
      %v307 = vpow.pop %v306
      %308 = vadd.xlane.f32.xlu0 %v305
      %v309 = vpop.xlane.xlu0 %308
      %310 = vadd.xlane.f32.xlu0 %v307
      %v311 = vpop.xlane.xlu0 %310
      %v312 = vlog2.pop %v309
      %v313 = vmul.f32 %v312, 0.6931472
      %v314 = vlog2.pop %v311
      %v315 = vmul.f32 %v314, 0.6931472
      %v316 = vsub.f32 %v300, %v313
      %v317 = vsub.f32 %v301, %v315
      %318 = vst [vmem:[%s5] sm:$0xff] %v316
      %319 = vst [vmem:[%s5 + $0x8] sm:$0xff] %v317
      %vm320 = vcmp.ge.s32.totalorder %v290, 5
      %vm321 = vcmp.lt.s32.totalorder %v290, 12
      %vm322 = vmand %vm320, %vm321
      %v323 = vsel %vm322, %v283, -inf
      %v324 = vsel %vm322, %v286, -inf
      %325 = vmax.xlane.f32.xlu0 %v323
      %v326 = vpop.xlane.xlu0 %325
      %327 = vmax.xlane.f32.xlu0 %v324
      %v328 = vpop.xlane.xlu0 %327
      %v329 = vsub.f32 %v283, %v326
      %v330 = vsub.f32 %v286, %v328
      %v331 = vsel %vm322, %v329, -inf
      %v332 = vsel %vm322, %v330, -inf
      %v333 = vmul.f32 %v331, 1.442695
      %v334 = vpow.pop %v333
      %v335 = vmul.f32 %v332, 1.442695
      %v336 = vpow.pop %v335
      %337 = vadd.xlane.f32.xlu0 %v334
      %v338 = vpop.xlane.xlu0 %337
      %339 = vadd.xlane.f32.xlu0 %v336
      %v340 = vpop.xlane.xlu0 %339
      %v341 = vlog2.pop %v338
      %v342 = vmul.f32 %v341, 0.6931472
      %v343 = vlog2.pop %v340
      %v344 = vmul.f32 %v343, 0.6931472
      %v345 = vsub.f32 %v329, %v342
      %v346 = vsub.f32 %v330, %v344
      %v347 = vld [vmem:[%s5] sm:$0xff]
      %v348 = vld [vmem:[%s5 + $0x8] sm:$0xff]
      %v349 = vsel %vm322, %v345, %v347
      %v350 = vsel %vm322, %v346, %v348
      %351 = vst [vmem:[%s5] sm:$0xff] %v349
      %352 = vst [vmem:[%s5 + $0x8] sm:$0xff] %v350
    $region33: #{_forward_impl.1} parent=1 // pred_fallthru
      _
    // Predicated region
    $region34: #{_forward_impl.1} parent=1 // pred_check
      _
    $region35: #{_forward_impl.1} parent=1 // pred_check_branch
      %354 = sbr.rel (0) target = $region37
    $region36: #{_forward_impl.1} parent=1 // pred_region
      _
    $region37: #{_forward_impl.1} parent=1 // pred_fallthru
      _
    // Predicated region
    $region38: #{_forward_impl.1} parent=1 // pred_check
      _
    $region39: #{_forward_impl.1} parent=1 // pred_check_branch
      %356 = sbr.rel (0) target = $region41
    $region40: #{_forward_impl.1} parent=1 // pred_region
      _
    $region41: #{_forward_impl.1} parent=1 // pred_fallthru
      _
    %357 = vsyncpa [#allocation4], 1

// kernel: _forward_impl.1
$region0: #{_forward_impl.1}
  #allocation0 [shape = 'u32[]', space=smem, size = 0x4, offset = 0x4, fixed_abs, tag = 'smem constant byte address 0x4 - core index']
  #allocation1 [shape = 'u32[144,128]{1,0:T(1,128)}', space=vmem, size = 0x12000, scoped, tag = 'internal scratch']
  #allocation2 [shape = 'f32[16,128]{1,0:T(8,128)}', space=vmem, size = 0x2000, scoped, tag = 'scratch operand']
  %s0 = inlined_call_operand.vmem [shape: bf16[16,128], index: 0, kind: input, shape index: {}]
  %s1 = inlined_call_operand.vmem [shape: bf16[128,128], index: 1, kind: input, shape index: {}]
  %s2 = inlined_call_operand.vmem [shape: f32[1,128], index: 2, kind: input, shape index: {}]
  %s3 = inlined_call_operand.hbm [shape: bf16[128,128], index: 3, kind: input, shape index: {}]
  %s4 = inlined_call_operand.vmem [shape: f32[1,128], index: 4, kind: input, shape index: {}]
  %s5 = inlined_call_operand.vmem [shape: f32[16,128], index: 5, kind: output, shape index: {}]
  %s6 = sld [smem:[#allocation0]]
  $region42: #{_forward_impl.1} parent=0
    _
  %s8 = ssub.s32 1, %s6
  %s9 = scalar_select 0, %s8, %s6
  $region1: #{_forward_impl.1} parent=0
    #allocation3 [shape = 'u8[32768]{0}', space=vmem, size = 0x8000, scoped, tag = 'input window, operand 3, single buffered']
    #allocation4 [shape = 's32[1]{0}', space=sflag, size = 0x4, scoped, tag = 'scoped memory for _forward_impl.1']
    %10 = vsyncpa [#allocation4], 0
    // Predicated region
    $region2: #{_forward_impl.1} parent=1 // pred_check
      _
    $region3: #{_forward_impl.1} parent=1 // pred_check_branch
      %12 = sbr.rel (0) target = $region5
    $region4: #{_forward_impl.1} parent=1 // pred_region
      _
    $region5: #{_forward_impl.1} parent=1 // pred_fallthru
      _
    // Predicated region
    $region6: #{_forward_impl.1} parent=1 // pred_check
      _
    $region7: #{_forward_impl.1} parent=1 // pred_check_branch
      %14 = sbr.rel (0) target = $region9
    $region8: #{_forward_impl.1} parent=1 // pred_region
      _
    $region9: #{_forward_impl.1} parent=1 // pred_fallthru
      _
    // Predicated region
    $region10: #{_forward_impl.1} parent=1 // pred_check
      _
    $region11: #{_forward_impl.1} parent=1 // pred_check_branch
      %16 = sbr.rel (0) target = $region13
    $region12: #{_forward_impl.1} parent=1 // pred_region
      _
    $region13: #{_forward_impl.1} parent=1 // pred_fallthru
      _
    // Predicated region
    $region14: #{_forward_impl.1} parent=1 // pred_check
      _
    $region15: #{_forward_impl.1} parent=1 // pred_check_branch
      %18 = sbr.rel (0) target = $region17
    $region16: #{_forward_impl.1} parent=1 // pred_region
      %s20 = ssub.s32 1024, 1024
      %21 = vsyncadd [#allocation4], %s20
      %s22 = sshll.u32 [#allocation3], 4
      %s23 = int_to_ptr.vmem [resolvable:$true] %s22
      %28 = dma.hbm_to_vmem [thread:$0]  %s3, 1024, %s23, [#allocation4], 64, 64, 4
    $region17: #{_forward_impl.1} parent=1 // pred_fallthru
      _
    // Predicated region
    $region18: #{_forward_impl.1} parent=1 // pred_check
      _
    $region19: #{_forward_impl.1} parent=1 // pred_check_branch
      %30 = sbr.rel (0) target = $region21
    $region20: #{_forward_impl.1} parent=1 // pred_region
      _
    $region21: #{_forward_impl.1} parent=1 // pred_fallthru
      _
    // Predicated region
    $region22: #{_forward_impl.1} parent=1 // pred_check
      _
    $region23: #{_forward_impl.1} parent=1 // pred_check_branch
      %32 = sbr.rel (0) target = $region25
    $region24: #{_forward_impl.1} parent=1 // pred_region
      %33 = dma.done [#allocation4], 1024
    $region25: #{_forward_impl.1} parent=1 // pred_fallthru
      _
    %p35 = scmp.eq.s32.totalorder 0, 0
    // Predicated region
    $region26: #{_forward_impl.1} parent=1 // pred_check
      %p36 = pneg %p35
    $region27: #{_forward_impl.1} parent=1 // pred_check_branch
      %38 = sbr.rel (%p36) target = $region29
    $region28: #{_forward_impl.1} parent=1 // pred_region
      %39 = vst [vmem:[#allocation2] sm:$0xff] 0.0
      %40 = vst [vmem:[#allocation2 + $0x8] sm:$0xff] 0.0
    $region29: #{_forward_impl.1} parent=1 // pred_fallthru
      _
    %v41 = vld [vmem:[#allocation2] sm:$0xff]
    %v42 = vld [vmem:[#allocation2 + $0x8] sm:$0xff]
    %v43 = vld [vmem:[%s0] sm:$0xf]
    %v44 = vld [vmem:[%s0 + $0x4] sm:$0xf]
    %v45 = vld [vmem:[%s1] sm:$0xf]
    %v46 = vld [vmem:[%s1 + $0x4] sm:$0xf]
    %v47 = vld [vmem:[%s1 + $0x8] sm:$0xf]
    %v48 = vld [vmem:[%s1 + $0xc] sm:$0xf]
    %v49 = vld [vmem:[%s1 + $0x10] sm:$0xf]
    %v50 = vld [vmem:[%s1 + $0x14] sm:$0xf]
    %v51 = vld [vmem:[%s1 + $0x18] sm:$0xf]
    %v52 = vld [vmem:[%s1 + $0x1c] sm:$0xf]
    %v53 = vld [vmem:[%s1 + $0x20] sm:$0xf]
    %v54 = vld [vmem:[%s1 + $0x24] sm:$0xf]
    %v55 = vld [vmem:[%s1 + $0x28] sm:$0xf]
    %v56 = vld [vmem:[%s1 + $0x2c] sm:$0xf]
    %v57 = vld [vmem:[%s1 + $0x30] sm:$0xf]
    %v58 = vld [vmem:[%s1 + $0x34] sm:$0xf]
    %v59 = vld [vmem:[%s1 + $0x38] sm:$0xf]
    %v60 = vld [vmem:[%s1 + $0x3c] sm:$0xf]
    %v63 = vunpack.c.l.b16 %v43
    %v64 = vunpack.c.l.b16 %v44
    %v65 = vpack.c.b16 %v64, %v63
    %v83 = vunpack.c.l.b16 %v45
    %v84 = vunpack.c.l.b16 %v46
    %v85 = vunpack.c.l.b16 %v47
    %v86 = vunpack.c.l.b16 %v48
    %v87 = vunpack.c.l.b16 %v49
    %v88 = vunpack.c.l.b16 %v50
    %v89 = vunpack.c.l.b16 %v51
    %v90 = vunpack.c.l.b16 %v52
    %v91 = vunpack.c.l.b16 %v53
    %v92 = vunpack.c.l.b16 %v54
    %v93 = vunpack.c.l.b16 %v55
    %v94 = vunpack.c.l.b16 %v56
    %v95 = vunpack.c.l.b16 %v57
    %v96 = vunpack.c.l.b16 %v58
    %v97 = vunpack.c.l.b16 %v59
    %v98 = vunpack.c.l.b16 %v60
    %v99 = vpack.c.b16 %v84, %v83
    %v100 = vpack.c.b16 %v86, %v85
    %v101 = vpack.c.b16 %v88, %v87
    %v102 = vpack.c.b16 %v90, %v89
    %v103 = vpack.c.b16 %v92, %v91
    %v104 = vpack.c.b16 %v94, %v93
    %v105 = vpack.c.b16 %v96, %v95
    %v106 = vpack.c.b16 %v98, %v97
    %115 = vmatprep.subr.bf16.mxu0 0
    %116 = vmatpush1.bf16.msra.mxu0 %v99
    %117 = vmatprep.subr.bf16.mxu0 0
    %118 = vmatpush1.bf16.msra.mxu0 %v100
    %119 = vmatprep.subr.bf16.mxu0 0
    %120 = vmatpush1.bf16.msra.mxu0 %v101
    %121 = vmatprep.subr.bf16.mxu0 0
    %122 = vmatpush1.bf16.msra.mxu0 %v102
    %123 = vmatprep.subr.bf16.mxu0 0
    %124 = vmatpush1.bf16.msra.mxu0 %v103
    %125 = vmatprep.subr.bf16.mxu0 0
    %126 = vmatpush1.bf16.msra.mxu0 %v104
    %127 = vmatprep.subr.bf16.mxu0 0
    %128 = vmatpush1.bf16.msra.mxu0 %v105
    %129 = vmatprep.subr.bf16.mxu0 0
    %130 = vmatpush1.bf16.msra.mxu0 %v106
    %131 = vmatprep.subr.bf16.mxu0 0
    %132 = vmatpush1.bf16.msra.mxu0 0
    %133 = vmatprep.subr.bf16.mxu0 0
    %134 = vmatpush1.bf16.msra.mxu0 0
    %135 = vmatprep.subr.bf16.mxu0 0
    %136 = vmatpush1.bf16.msra.mxu0 0
    %137 = vmatprep.subr.bf16.mxu0 0
    %138 = vmatpush1.bf16.msra.mxu0 0
    %139 = vmatprep.subr.bf16.mxu0 0
    %140 = vmatpush1.bf16.msra.mxu0 0
    %141 = vmatprep.subr.bf16.mxu0 0
    %142 = vmatpush1.bf16.msra.mxu0 0
    %143 = vmatprep.subr.bf16.mxu0 0
    %144 = vmatpush1.bf16.msra.mxu0 0
    %145 = vmatprep.subr.bf16.mxu0 0
    %146 = vmatpush1.bf16.msra.mxu0 0
    %147 = vmatprep.mubr.bf16.mxu0 0
    %148 = vmatmul.mubr.bf16.gmra.mrb[0].mxu0 %v65
    %v149 = vpop.f32.mrb[0].mxu0
    %v150 = vadd.f32 0.0, %v149
    %v151 = vpop.f32.mrb[0].mxu0
    %v152 = vpop.f32.mrb[0].mxu0
    %v153 = vadd.f32 0.0, %v152
    %v154 = vpop.f32.mrb[0].mxu0
    %155 = vdwg.mxu0
    %v156 = vadd.f32 %v41, %v150
    %v157 = vadd.f32 %v42, %v153
    %158 = vst [vmem:[#allocation2] sm:$0xff] %v156
    %159 = vst [vmem:[#allocation2 + $0x8] sm:$0xff] %v157
    // Predicated region
    $region30: #{_forward_impl.1} parent=1 // pred_check
      %p160 = pneg %p35
    $region31: #{_forward_impl.1} parent=1 // pred_check_branch
      %162 = sbr.rel (%p160) target = $region33
    $region32: #{_forward_impl.1} parent=1 // pred_region
      %v163 = vld [vmem:[#allocation2] sm:$0xff]
      %v164 = vld [vmem:[#allocation2 + $0x8] sm:$0xff]
      %v165 = vld [vmem:[%s2] sm:$0x1]
      %v167 = vlaneseq
      %v168 = vshrl.u32 %v167, 7
      %v169 = vsub.s32 0, %v168
      %v170 = vrot.slane %v165, %v169
      %v172 = vadd.f32 %v163, %v170
      %v173 = vadd.f32 %v164, %v170
      %v174 = vmax.f32 %v172, 0.0
      %v175 = vmax.f32 %v173, 0.0
      %v176 = vpack.c.bf16 %v175, %v174
      %v177 = vld [vmem:[#allocation3] sm:$0xf]
      %v178 = vld [vmem:[#allocation3 + $0x4] sm:$0xf]
      %v179 = vld [vmem:[#allocation3 + $0x8] sm:$0xf]
      %v180 = vld [vmem:[#allocation3 + $0xc] sm:$0xf]
      %v181 = vld [vmem:[#allocation3 + $0x10] sm:$0xf]
      %v182 = vld [vmem:[#allocation3 + $0x14] sm:$0xf]
      %v183 = vld [vmem:[#allocation3 + $0x18] sm:$0xf]
      %v184 = vld [vmem:[#allocation3 + $0x1c] sm:$0xf]
      %v185 = vld [vmem:[#allocation3 + $0x20] sm:$0xf]
      %v186 = vld [vmem:[#allocation3 + $0x24] sm:$0xf]
      %v187 = vld [vmem:[#allocation3 + $0x28] sm:$0xf]
      %v188 = vld [vmem:[#allocation3 + $0x2c] sm:$0xf]
      %v189 = vld [vmem:[#allocation3 + $0x30] sm:$0xf]
      %v190 = vld [vmem:[#allocation3 + $0x34] sm:$0xf]
      %v191 = vld [vmem:[#allocation3 + $0x38] sm:$0xf]
      %v192 = vld [vmem:[#allocation3 + $0x3c] sm:$0xf]
      %v193 = vld [vmem:[%s4] sm:$0x1]
      %v195 = vlaneseq
      %v196 = vshrl.u32 %v195, 7
      %v197 = vsub.s32 0, %v196
      %v198 = vrot.slane %v193, %v197
      %v216 = vunpack.c.l.b16 %v177
      %v217 = vunpack.c.l.b16 %v178
      %v218 = vunpack.c.l.b16 %v179
      %v219 = vunpack.c.l.b16 %v180
      %v220 = vunpack.c.l.b16 %v181
      %v221 = vunpack.c.l.b16 %v182
      %v222 = vunpack.c.l.b16 %v183
      %v223 = vunpack.c.l.b16 %v184
      %v224 = vunpack.c.l.b16 %v185
      %v225 = vunpack.c.l.b16 %v186
      %v226 = vunpack.c.l.b16 %v187
      %v227 = vunpack.c.l.b16 %v188
      %v228 = vunpack.c.l.b16 %v189
      %v229 = vunpack.c.l.b16 %v190
      %v230 = vunpack.c.l.b16 %v191
      %v231 = vunpack.c.l.b16 %v192
      %v232 = vpack.c.b16 %v217, %v216
      %v233 = vpack.c.b16 %v219, %v218
      %v234 = vpack.c.b16 %v221, %v220
      %v235 = vpack.c.b16 %v223, %v222
      %v236 = vpack.c.b16 %v225, %v224
      %v237 = vpack.c.b16 %v227, %v226
      %v238 = vpack.c.b16 %v229, %v228
      %v239 = vpack.c.b16 %v231, %v230
      %248 = vmatprep.subr.bf16.mxu0 0
      %249 = vmatpush1.bf16.msra.mxu0 %v232
      %250 = vmatprep.subr.bf16.mxu0 0
      %251 = vmatpush1.bf16.msra.mxu0 %v233
      %252 = vmatprep.subr.bf16.mxu0 0
      %253 = vmatpush1.bf16.msra.mxu0 %v234
      %254 = vmatprep.subr.bf16.mxu0 0
      %255 = vmatpush1.bf16.msra.mxu0 %v235
      %256 = vmatprep.subr.bf16.mxu0 0
      %257 = vmatpush1.bf16.msra.mxu0 %v236
      %258 = vmatprep.subr.bf16.mxu0 0
      %259 = vmatpush1.bf16.msra.mxu0 %v237
      %260 = vmatprep.subr.bf16.mxu0 0
      %261 = vmatpush1.bf16.msra.mxu0 %v238
      %262 = vmatprep.subr.bf16.mxu0 0
      %263 = vmatpush1.bf16.msra.mxu0 %v239
      %264 = vmatprep.subr.bf16.mxu0 0
      %265 = vmatpush1.bf16.msra.mxu0 0
      %266 = vmatprep.subr.bf16.mxu0 0
      %267 = vmatpush1.bf16.msra.mxu0 0
      %268 = vmatprep.subr.bf16.mxu0 0
      %269 = vmatpush1.bf16.msra.mxu0 0
      %270 = vmatprep.subr.bf16.mxu0 0
      %271 = vmatpush1.bf16.msra.mxu0 0
      %272 = vmatprep.subr.bf16.mxu0 0
      %273 = vmatpush1.bf16.msra.mxu0 0
      %274 = vmatprep.subr.bf16.mxu0 0
      %275 = vmatpush1.bf16.msra.mxu0 0
      %276 = vmatprep.subr.bf16.mxu0 0
      %277 = vmatpush1.bf16.msra.mxu0 0
      %278 = vmatprep.subr.bf16.mxu0 0
      %279 = vmatpush1.bf16.msra.mxu0 0
      %280 = vmatprep.mubr.bf16.mxu0 0
      %281 = vmatmul.mubr.bf16.gmra.mrb[0].mxu0 %v176
      %v282 = vpop.f32.mrb[0].mxu0
      %v283 = vadd.f32 %v198, %v282
      %v284 = vpop.f32.mrb[0].mxu0
      %v285 = vpop.f32.mrb[0].mxu0
      %v286 = vadd.f32 %v198, %v285
      %v287 = vpop.f32.mrb[0].mxu0
      %288 = vdwg.mxu0
      %v289 = vlaneseq
      %v290 = vand.u32 %v289, 127
      %vm291 = vcmp.ge.s32.totalorder %v290, 0
      %vm292 = vcmp.lt.s32.totalorder %v290, 5
      %vm293 = vmand %vm291, %vm292
      %v294 = vsel %vm293, %v283, -inf
      %v295 = vsel %vm293, %v286, -inf
      %296 = vmax.xlane.f32.xlu0 %v294
      %v297 = vpop.xlane.xlu0 %296
      %298 = vmax.xlane.f32.xlu0 %v295
      %v299 = vpop.xlane.xlu0 %298
      %v300 = vsub.f32 %v283, %v297
      %v301 = vsub.f32 %v286, %v299
      %v302 = vsel %vm293, %v300, -inf
      %v303 = vsel %vm293, %v301, -inf
      %v304 = vmul.f32 %v302, 1.442695
      %v305 = vpow.pop %v304
      %v306 = vmul.f32 %v303, 1.442695
      %v307 = vpow.pop %v306
      %308 = vadd.xlane.f32.xlu0 %v305
      %v309 = vpop.xlane.xlu0 %308
      %310 = vadd.xlane.f32.xlu0 %v307
      %v311 = vpop.xlane.xlu0 %310
      %v312 = vlog2.pop %v309
      %v313 = vmul.f32 %v312, 0.6931472
      %v314 = vlog2.pop %v311
      %v315 = vmul.f32 %v314, 0.6931472
      %v316 = vsub.f32 %v300, %v313
      %v317 = vsub.f32 %v301, %v315
      %318 = vst [vmem:[%s5] sm:$0xff] %v316
      %319 = vst [vmem:[%s5 + $0x8] sm:$0xff] %v317
      %vm320 = vcmp.ge.s32.totalorder %v290, 5
      %vm321 = vcmp.lt.s32.totalorder %v290, 12
      %vm322 = vmand %vm320, %vm321
      %v323 = vsel %vm322, %v283, -inf
      %v324 = vsel %vm322, %v286, -inf
      %325 = vmax.xlane.f32.xlu0 %v323
      %v326 = vpop.xlane.xlu0 %325
      %327 = vmax.xlane.f32.xlu0 %v324
      %v328 = vpop.xlane.xlu0 %327
      %v329 = vsub.f32 %v283, %v326
      %v330 = vsub.f32 %v286, %v328
      %v331 = vsel %vm322, %v329, -inf
      %v332 = vsel %vm322, %v330, -inf
      %v333 = vmul.f32 %v331, 1.442695
      %v334 = vpow.pop %v333
      %v335 = vmul.f32 %v332, 1.442695
      %v336 = vpow.pop %v335
      %337 = vadd.xlane.f32.xlu0 %v334
      %v338 = vpop.xlane.xlu0 %337
      %339 = vadd.xlane.f32.xlu0 %v336
      %v340 = vpop.xlane.xlu0 %339
      %v341 = vlog2.pop %v338
      %v342 = vmul.f32 %v341, 0.6931472
      %v343 = vlog2.pop %v340
      %v344 = vmul.f32 %v343, 0.6931472
      %v345 = vsub.f32 %v329, %v342
      %v346 = vsub.f32 %v330, %v344
      %v347 = vld [vmem:[%s5] sm:$0xff]
      %v348 = vld [vmem:[%s5 + $0x8] sm:$0xff]
      %v349 = vsel %vm322, %v345, %v347
      %v350 = vsel %vm322, %v346, %v348
      %351 = vst [vmem:[%s5] sm:$0xff] %v349
      %352 = vst [vmem:[%s5 + $0x8] sm:$0xff] %v350
    $region33: #{_forward_impl.1} parent=1 // pred_fallthru
      _
    // Predicated region
    $region34: #{_forward_impl.1} parent=1 // pred_check
      _
    $region35: #{_forward_impl.1} parent=1 // pred_check_branch
      %354 = sbr.rel (0) target = $region37
    $region36: #{_forward_impl.1} parent=1 // pred_region
      _
    $region37: #{_forward_impl.1} parent=1 // pred_fallthru
      _
    // Predicated region
    $region38: #{_forward_impl.1} parent=1 // pred_check
      _
    $region39: #{_forward_impl.1} parent=1 // pred_check_branch
      %356 = sbr.rel (0) target = $region41
    $region40: #{_forward_impl.1} parent=1 // pred_region
      _
    $region41: #{_forward_impl.1} parent=1 // pred_fallthru
      _
    %357 = vsyncpa [#allocation4], 1

</llo_original>
